<compile_context>
chip_gen: v5e
topology: v5e:2x2
jax: 0.10.0
libtpu: 0.0.40
codegen_flags: <defaults>
</compile_context>

<pallas_src>
import functools

import jax
import jax.numpy as jnp
from jax import lax
from jax.experimental import pallas as pl
from jax.experimental.pallas import tpu as pltpu


def _round_up(v, m):
    return ((v + m - 1) // m) * m


# ----------------------------- Pallas kernels ------------------------------

def _decoder_kernel_style(
    x_ref, s_ref,
    w0s_ref, w0x_ref, b0a_ref, w0b_ref, b0b_ref,     # ConcatBlock 0 (split weight)
    w1a_ref, b1a_ref, w1b_ref, b1b_ref,              # mlp1
    w2s_ref, w2x_ref, b2a_ref, w2b_ref, b2b_ref,     # ConcatBlock 1 (split weight)
    w3a_ref, b3a_ref, w3b_ref, b3b_ref,              # mlp2 (output-padded/permuted)
    out_ref,
):
    bf16 = jnp.bfloat16
    f32 = jnp.float32

    x32 = x_ref[...]                     # (TM, H2p) f32 -- kept f32 for residual
    xb = x32.astype(bf16)                # MXU operand
    s = s_ref[...]                       # (1, S_pad) f32

    # Fold the broadcast style contribution into the first-layer biases (tiny dots,
    # done once per row tile; keeps the XLA pre-kernel path free of extra matmuls).
    b0 = jnp.dot(s, w0s_ref[...], preferred_element_type=f32) + b0a_ref[...]
    b2 = jnp.dot(s, w2s_ref[...], preferred_element_type=f32) + b2a_ref[...]

    # --- style_blocks[0] : ConcatBlock + residual ---
    h = jnp.dot(xb, w0x_ref[...], preferred_element_type=f32) + b0
    h = jnp.maximum(h, 0.0)
    h = jnp.dot(h.astype(bf16), w0b_ref[...],
                preferred_element_type=f32) + b0b_ref[...] + x32

    # --- mlp1 : 2Hp -> 4H -> 4H ---
    h1 = jnp.dot(h.astype(bf16), w1a_ref[...],
                 preferred_element_type=f32) + b1a_ref[...]
    h1 = jnp.maximum(h1, 0.0)
    h1 = jnp.dot(h1.astype(bf16), w1b_ref[...],
                 preferred_element_type=f32) + b1b_ref[...]

    # --- style_blocks[1] : ConcatBlock + residual ---
    h2 = jnp.dot(h1.astype(bf16), w2x_ref[...], preferred_element_type=f32) + b2
    h2 = jnp.maximum(h2, 0.0)
    h2 = jnp.dot(h2.astype(bf16), w2b_ref[...],
                 preferred_element_type=f32) + b2b_ref[...] + h1

    # --- mlp2 : 4H -> O_pad -> O_pad ---
    o = jnp.dot(h2.astype(bf16), w3a_ref[...],
                preferred_element_type=f32) + b3a_ref[...]
    o = jnp.maximum(o, 0.0)
    o = jnp.dot(o.astype(bf16), w3b_ref[...],
                preferred_element_type=f32) + b3b_ref[...]

    out_ref[...] = o.astype(out_ref.dtype)


def _decoder_kernel_nostyle(
    x_ref,
    w1a_ref, b1a_ref, w1b_ref, b1b_ref,              # mlp1
    w3a_ref, b3a_ref, w3b_ref, b3b_ref,              # mlp2
    out_ref,
):
    bf16 = jnp.bfloat16
    f32 = jnp.float32
    xb = x_ref[...].astype(bf16)

    h1 = jnp.dot(xb, w1a_ref[...], preferred_element_type=f32) + b1a_ref[...]
    h1 = jnp.maximum(h1, 0.0)
    h1 = jnp.dot(h1.astype(bf16), w1b_ref[...],
                 preferred_element_type=f32) + b1b_ref[...]

    o = jnp.dot(h1.astype(bf16), w3a_ref[...],
                preferred_element_type=f32) + b3a_ref[...]
    o = jnp.maximum(o, 0.0)
    o = jnp.dot(o.astype(bf16), w3b_ref[...],
                preferred_element_type=f32) + b3b_ref[...]

    out_ref[...] = o.astype(out_ref.dtype)


# ------------------------------ Parameters ---------------------------------

def init_params(key, hidden_size, fut_len, number_of_agents, style_input_size):
    """PyTorch-equivalent parameters, stored as (in_features, out_features), f32."""
    H2, H4 = 2 * hidden_size, 4 * hidden_size
    O = number_of_agents * 2 * fut_len
    S = style_input_size

    def lin(k, fan_in, fan_out):
        kw, kb = jax.random.split(k)
        bound = 1.0 / jnp.sqrt(float(fan_in))
        w = jax.random.uniform(kw, (fan_in, fan_out), jnp.float32, -bound, bound)
        b = jax.random.uniform(kb, (1, fan_out), jnp.float32, -bound, bound)
        return w, b

    ks = jax.random.split(key, 8)
    p = {}
    p["w0a"], p["b0a"] = lin(ks[0], S + H2, H2)     # ConcatBlock 0, rows [0:2H]=x, [2H:]=style
    p["w0b"], p["b0b"] = lin(ks[1], H2, H2)
    p["w1a"], p["b1a"] = lin(ks[2], H2, H4)         # mlp1
    p["w1b"], p["b1b"] = lin(ks[3], H4, H4)
    p["w2a"], p["b2a"] = lin(ks[4], S + H4, H4)     # ConcatBlock 1
    p["w2b"], p["b2b"] = lin(ks[5], H4, H4)
    p["w3a"], p["b3a"] = lin(ks[6], H4, O)          # mlp2
    p["w3b"], p["b3b"] = lin(ks[7], O, O)
    return p


def prepare_params(params, *, hidden_size, fut_len, number_of_agents):
    """One-time (offline) transform of torch-layout params into kernel operands.

    - Splits the cat(x, style) weights into an x-part (bf16, MXU) and a style part
      (f32, folded into the bias in-kernel).
    - Pads the 2H hidden width and the style width up to 128 lanes.
    - Permutes mlp2's output columns from (A, F, 2) to (F, A, 2) ordering and pads
      the output feature dim to a lane-dense multiple of 128.
    """
    H2, H4 = 2 * hidden_size, 4 * hidden_size
    A, F = number_of_agents, fut_len
    O = A * 2 * F
    H2p = _round_up(H2, 128)
    O_pad = _round_up(O, 128)
    S = params["w0a"].shape[0] - H2
    S_pad = _round_up(S, 128)
    bf16 = jnp.bfloat16

    def padw(w, rows, cols, dtype=bf16):
        return jnp.pad(w, ((0, rows - w.shape[0]), (0, cols - w.shape[1]))).astype(dtype)

    def padb(b, cols):
        return jnp.pad(b, ((0, 0), (0, cols - b.shape[1])))

    kp = {}
    # ConcatBlock 0 (H2 padded to 128 lanes everywhere).
    kp["w0x"] = padw(params["w0a"][:H2], H2p, H2p)                       # bf16
    kp["w0s"] = padw(params["w0a"][H2:], S_pad, H2p, dtype=jnp.float32)  # f32 (fold)
    kp["b0a"] = padb(params["b0a"], H2p)
    kp["w0b"] = padw(params["w0b"], H2p, H2p)
    kp["b0b"] = padb(params["b0b"], H2p)
    # mlp1 (input dim padded to H2p; H4 is already 128-aligned for this config).
    kp["w1a"] = padw(params["w1a"], H2p, H4)
    kp["b1a"] = params["b1a"]
    kp["w1b"] = params["w1b"].astype(bf16)
    kp["b1b"] = params["b1b"]
    # ConcatBlock 1.
    kp["w2x"] = params["w2a"][:H4].astype(bf16)
    kp["w2s"] = padw(params["w2a"][H4:], S_pad, H4, dtype=jnp.float32)
    kp["b2a"] = params["b2a"]
    kp["w2b"] = params["w2b"].astype(bf16)
    kp["b2b"] = params["b2b"]
    # mlp2: permute output columns (A, F, 2) -> (F, A, 2) ordering, pad O -> 128.
    perm = jnp.arange(O).reshape(A, F, 2).transpose(1, 0, 2).reshape(O)
    kp["w3a"] = padw(params["w3a"], H4, O_pad)
    kp["b3a"] = padb(params["b3a"], O_pad)
    kp["w3b"] = padw(params["w3b"][:, perm], O_pad, O_pad)
    kp["b3b"] = padb(params["b3b"][:, perm], O_pad)
    return kp


# ------------------------------- Wrapper ------------------------------------

@functools.partial(jax.jit, static_argnames=("hidden_size", "fut_len",
                                             "number_of_agents"))
def simple_decoder_forward(latent_space, kparams, style_feat_space,
                           *, hidden_size, fut_len, number_of_agents):
    """latent_space: (2*B, hidden_size); style_feat_space: (1, S) or None."""
    H2, H4 = 2 * hidden_size, 4 * hidden_size
    A, F = number_of_agents, fut_len
    O = A * 2 * F
    H2p = _round_up(H2, 128)
    O_pad = kparams["w3b"].shape[1]
    B = latent_space.shape[0] // 2

    # torch.stack(latent.split(2, dim=0)).flatten(1) == row-major reshape.
    # Keep x in f32 (residual skip uses the un-rounded latent); pad cols to 128.
    x = latent_space.reshape(B, H2).astype(jnp.float32)
    if H2p > H2:
        x = jnp.pad(x, ((0, 0), (0, H2p - H2)))

    # Row (M) tiling: weights stay VMEM-resident via constant index_maps; rows are
    # streamed.  Large tiles amortize the ~0.35us/step overhead and the per-layer
    # MXU weight pushes; for B >= 32 force >= 2 tiles so the "parallel" axis can
    # shard across v7x's two TensorCores (no effect on single-TC v5e/v6e).
    if B < 32:
        block_m = B
    else:
        block_m = min(1024, _round_up(pl.cdiv(B, 2), 16))
    grid = (pl.cdiv(B, block_m),)

    def row_spec(n):
        return pl.BlockSpec((block_m, n), lambda i: (i, 0))

    def const_spec(a):
        return pl.BlockSpec(a.shape, lambda i: (0, 0))

    if style_feat_space is not None:
        S_pad = kparams["w0s"].shape[0]
        s = style_feat_space.astype(jnp.float32).reshape(1, -1)
        s = jnp.pad(s, ((0, 0), (0, S_pad - s.shape[1])))
        args = (x, s,
                kparams["w0s"], kparams["w0x"], kparams["b0a"],
                kparams["w0b"], kparams["b0b"],
                kparams["w1a"], kparams["b1a"], kparams["w1b"], kparams["b1b"],
                kparams["w2s"], kparams["w2x"], kparams["b2a"],
                kparams["w2b"], kparams["b2b"],
                kparams["w3a"], kparams["b3a"], kparams["w3b"], kparams["b3b"])
        kernel = _decoder_kernel_style
        flops = 2 * B * (2 * H2p * H2p + H2p * H4 + 3 * H4 * H4
                         + H4 * O_pad + O_pad * O_pad)
    else:
        args = (x,
                kparams["w1a"], kparams["b1a"], kparams["w1b"], kparams["b1b"],
                kparams["w3a"], kparams["b3a"], kparams["w3b"], kparams["b3b"])
        kernel = _decoder_kernel_nostyle
        flops = 2 * B * (H2p * H4 + H4 * H4 + H4 * O_pad + O_pad * O_pad)

    in_specs = [row_spec(H2p)] + [const_spec(a) for a in args[1:]]
    bytes_accessed = (sum(a.size * a.dtype.itemsize for a in args)
                      + B * O_pad * 2)

    out = pl.pallas_call(
        kernel,
        grid=grid,
        out_shape=jax.ShapeDtypeStruct((B, O_pad), jnp.bfloat16),  # bf16 writeback
        in_specs=in_specs,
        out_specs=row_spec(O_pad),
        compiler_params=pltpu.CompilerParams(
            dimension_semantics=("parallel",)),      # no vmem_limit: working set < 4 MiB
        cost_estimate=pl.CostEstimate(
            flops=flops, transcendentals=0, bytes_accessed=bytes_accessed),
    )(*args)

    # Kernel output columns are (F, A, 2)-ordered (pre-permuted weights) and
    # lane-padded; slice padding, cast back to f32, cheap leading-axis transpose.
    out = out[:, :O].astype(jnp.float32).reshape(B, F, A, 2)
    out = jnp.transpose(out, (1, 0, 2, 3)).reshape(F, B * A, 2)
    return out


# ------------------------------ References ----------------------------------

def _reference_forward_f32(latent_space, params, style, *, hidden_size, fut_len,
                           number_of_agents):
    """Faithful f32 re-implementation of the PyTorch forward (explicit concat)."""
    H2 = 2 * hidden_size
    A, F = number_of_agents, fut_len
    B = latent_space.shape[0] // 2
    x = latent_space.reshape(B, H2).astype(jnp.float32)

    def block(h, wa, ba, wb, bb, s):
        cs = jnp.concatenate([h, jnp.broadcast_to(s, (B, s.shape[-1]))], axis=1)
        return jnp.maximum(cs @ wa + ba, 0.0) @ wb + bb + h

    h = x
    if style is not None:
        h = block(h, params["w0a"], params["b0a"], params["w0b"], params["b0b"], style)
    h = jnp.maximum(h @ params["w1a"] + params["b1a"], 0.0) @ params["w1b"] + params["b1b"]
    if style is not None:
        h = block(h, params["w2a"], params["b2a"], params["w2b"], params["b2b"], style)
    o = jnp.maximum(h @ params["w3a"] + params["b3a"], 0.0) @ params["w3b"] + params["b3b"]
    o = o.reshape(B, A, F, 2).reshape(B * A, F, 2)
    return jnp.transpose(o, (1, 0, 2))


def _reference_forward_mixed(latent_space, params, style, *, hidden_size, fut_len,
                             number_of_agents):
    """Same math with the kernel's bf16/f32 mixed precision (f32 residuals, f32
    style fold, bf16 final store), built from the original torch-layout params —
    cross-checks the split/fold/pad/permute transforms."""
    H2, H4 = 2 * hidden_size, 4 * hidden_size
    A, F = number_of_agents, fut_len
    B = latent_space.shape[0] // 2
    bf16 = jnp.bfloat16
    hi = lax.Precision.HIGHEST
    mm = lambda a, w: jnp.dot(a.astype(bf16), w.astype(bf16),
                              preferred_element_type=jnp.float32)
    x = latent_space.reshape(B, H2).astype(jnp.float32)
    h = x
    if style is not None:
        s = style.astype(jnp.float32).reshape(1, -1)
        b0 = jnp.dot(s, params["w0a"][H2:], precision=hi) + params["b0a"]
        h = jnp.maximum(mm(x, params["w0a"][:H2]) + b0, 0.0)
        h = mm(h, params["w0b"]) + params["b0b"] + x
    h1 = jnp.maximum(mm(h, params["w1a"]) + params["b1a"], 0.0)
    h1 = mm(h1, params["w1b"]) + params["b1b"]
    h2 = h1
    if style is not None:
        b2 = jnp.dot(s, params["w2a"][H4:], precision=hi) + params["b2a"]
        h2 = jnp.maximum(mm(h1, params["w2a"][:H4]) + b2, 0.0)
        h2 = mm(h2, params["w2b"]) + params["b2b"] + h1
    o = jnp.maximum(mm(h2, params["w3a"]) + params["b3a"], 0.0)
    o = mm(o, params["w3b"]) + params["b3b"]
    o = o.astype(bf16).astype(jnp.float32)           # kernel stores bf16
    o = o.reshape(B, A, F, 2).reshape(B * A, F, 2)
    return jnp.transpose(o, (1, 0, 2))


# --------------------------------- Main --------------------------------------

if __name__ == "__main__":
    obs_len = 8            # unused in forward (matches the PyTorch module)
    fut_len = 8
    hidden_size = 32
    number_of_agents = 2
    style_input_size = 16
    B = 2

    key = jax.random.PRNGKey(0)
    k_lat, k_style, k_par, k_lat2 = jax.random.split(key, 4)

    latent_space = jax.random.normal(k_lat, (2 * B, hidden_size), jnp.float32)
    style_feat_space = jax.random.normal(k_style, (1, style_input_size), jnp.float32)
    params = init_params(k_par, hidden_size, fut_len, number_of_agents,
                         style_input_size)
    kparams = prepare_params(params, hidden_size=hidden_size, fut_len=fut_len,
                             number_of_agents=number_of_agents)

    kwargs = dict(hidden_size=hidden_size, fut_len=fut_len,
                  number_of_agents=number_of_agents)

    # With style (both ConcatBlocks + both MLPs in-kernel, single row tile).
    out = simple_decoder_forward(latent_space, kparams, style_feat_space, **kwargs)
    out = jax.block_until_ready(out)
    assert out.shape == (fut_len, B * number_of_agents, 2), out.shape
    ref_m = _reference_forward_mixed(latent_space, params, style_feat_space, **kwargs)
    ref_f = _reference_forward_f32(latent_space, params, style_feat_space, **kwargs)
    assert jnp.allclose(out, ref_m, atol=1e-2, rtol=1e-2), "style path mismatch (mixed)"
    assert jnp.allclose(out, ref_f, atol=7e-2, rtol=7e-2), "style path mismatch (f32)"

    # style_feat_space == None path (ConcatBlocks become identity).
    out_ns = simple_decoder_forward(latent_space, kparams, None, **kwargs)
    out_ns = jax.block_until_ready(out_ns)
    ref_m_ns = _reference_forward_mixed(latent_space, params, None, **kwargs)
    ref_f_ns = _reference_forward_f32(latent_space, params, None, **kwargs)
    assert jnp.allclose(out_ns, ref_m_ns, atol=1e-2, rtol=1e-2), "no-style mismatch (mixed)"
    assert jnp.allclose(out_ns, ref_f_ns, atol=7e-2, rtol=7e-2), "no-style mismatch (f32)"

    # Larger batch: exercises the multi-tile "parallel" grid (>= 2 row tiles for
    # v7x megacore) and a partial last tile (B2=100 -> block_m=64, grid=(2,)).
    B2 = 100
    latent2 = jax.random.normal(k_lat2, (2 * B2, hidden_size), jnp.float32)
    out2 = simple_decoder_forward(latent2, kparams, style_feat_space, **kwargs)
    out2 = jax.block_until_ready(out2)
    assert out2.shape == (fut_len, B2 * number_of_agents, 2), out2.shape
    ref2 = _reference_forward_mixed(latent2, params, style_feat_space, **kwargs)
    assert jnp.allclose(out2, ref2, atol=1e-2, rtol=1e-2), "multi-tile mismatch (mixed)"

    print("KERNEL_OK")
</pallas_src>

<mosaic_0001>
module attributes {stable_mosaic.version = 11 : i64} {
  func.func @_decoder_kernel_style(%arg0: i32, %arg1: memref<2x128xf32, #tpu.memory_space<vmem>>, %arg2: memref<1x128xf32, #tpu.memory_space<vmem>>, %arg3: memref<128x128xf32, #tpu.memory_space<vmem>>, %arg4: memref<128x128xbf16, #tpu.memory_space<vmem>>, %arg5: memref<1x128xf32, #tpu.memory_space<vmem>>, %arg6: memref<128x128xbf16, #tpu.memory_space<vmem>>, %arg7: memref<1x128xf32, #tpu.memory_space<vmem>>, %arg8: memref<128x128xbf16, #tpu.memory_space<vmem>>, %arg9: memref<1x128xf32, #tpu.memory_space<vmem>>, %arg10: memref<128x128xbf16, #tpu.memory_space<vmem>>, %arg11: memref<1x128xf32, #tpu.memory_space<vmem>>, %arg12: memref<128x128xf32, #tpu.memory_space<vmem>>, %arg13: memref<128x128xbf16, #tpu.memory_space<vmem>>, %arg14: memref<1x128xf32, #tpu.memory_space<vmem>>, %arg15: memref<128x128xbf16, #tpu.memory_space<vmem>>, %arg16: memref<1x128xf32, #tpu.memory_space<vmem>>, %arg17: memref<128x128xbf16, #tpu.memory_space<vmem>>, %arg18: memref<1x128xf32, #tpu.memory_space<vmem>>, %arg19: memref<128x128xbf16, #tpu.memory_space<vmem>>, %arg20: memref<1x128xf32, #tpu.memory_space<vmem>>, %arg21: memref<2x128xbf16, #tpu.memory_space<vmem>>) attributes {dimension_semantics = [#tpu.dimension_semantics<parallel>], iteration_bounds = array<i64: 1>, scalar_prefetch = 0 : i64, scratch_operands = 0 : i64, tpu.core_type = #tpu.core_type<tc>, window_params = [{transform_indices = @transform_0, window_bounds = array<i64: 2, 128>}, {pipeline_mode = #tpu.pipeline_mode<synchronous>, transform_indices = @transform_1, window_bounds = array<i64: 1, 128>}, {pipeline_mode = #tpu.pipeline_mode<synchronous>, transform_indices = @transform_2, window_bounds = array<i64: 128, 128>}, {pipeline_mode = #tpu.pipeline_mode<synchronous>, transform_indices = @transform_3, window_bounds = array<i64: 128, 128>}, {pipeline_mode = #tpu.pipeline_mode<synchronous>, transform_indices = @transform_4, window_bounds = array<i64: 1, 128>}, {pipeline_mode = #tpu.pipeline_mode<synchronous>, transform_indices = @transform_5, window_bounds = array<i64: 128, 128>}, {pipeline_mode = #tpu.pipeline_mode<synchronous>, transform_indices = @transform_6, window_bounds = array<i64: 1, 128>}, {pipeline_mode = #tpu.pipeline_mode<synchronous>, transform_indices = @transform_7, window_bounds = array<i64: 128, 128>}, {pipeline_mode = #tpu.pipeline_mode<synchronous>, transform_indices = @transform_8, window_bounds = array<i64: 1, 128>}, {pipeline_mode = #tpu.pipeline_mode<synchronous>, transform_indices = @transform_9, window_bounds = array<i64: 128, 128>}, {pipeline_mode = #tpu.pipeline_mode<synchronous>, transform_indices = @transform_10, window_bounds = array<i64: 1, 128>}, {pipeline_mode = #tpu.pipeline_mode<synchronous>, transform_indices = @transform_11, window_bounds = array<i64: 128, 128>}, {pipeline_mode = #tpu.pipeline_mode<synchronous>, transform_indices = @transform_12, window_bounds = array<i64: 128, 128>}, {pipeline_mode = #tpu.pipeline_mode<synchronous>, transform_indices = @transform_13, window_bounds = array<i64: 1, 128>}, {pipeline_mode = #tpu.pipeline_mode<synchronous>, transform_indices = @transform_14, window_bounds = array<i64: 128, 128>}, {pipeline_mode = #tpu.pipeline_mode<synchronous>, transform_indices = @transform_15, window_bounds = array<i64: 1, 128>}, {pipeline_mode = #tpu.pipeline_mode<synchronous>, transform_indices = @transform_16, window_bounds = array<i64: 128, 128>}, {pipeline_mode = #tpu.pipeline_mode<synchronous>, transform_indices = @transform_17, window_bounds = array<i64: 1, 128>}, {pipeline_mode = #tpu.pipeline_mode<synchronous>, transform_indices = @transform_18, window_bounds = array<i64: 128, 128>}, {pipeline_mode = #tpu.pipeline_mode<synchronous>, transform_indices = @transform_19, window_bounds = array<i64: 1, 128>}, {transform_indices = @transform_20, window_bounds = array<i64: 2, 128>}]} {
    %c0 = arith.constant 0 : index
    %c0_0 = arith.constant 0 : index
    %0 = vector.load %arg1[%c0, %c0_0] : memref<2x128xf32, #tpu.memory_space<vmem>>, vector<2x128xf32>
    %1 = arith.truncf %0 : vector<2x128xf32> to vector<2x128xbf16>
    %c0_1 = arith.constant 0 : index
    %c0_2 = arith.constant 0 : index
    %2 = vector.load %arg2[%c0_1, %c0_2] : memref<1x128xf32, #tpu.memory_space<vmem>>, vector<1x128xf32>
    %c0_3 = arith.constant 0 : index
    %c0_4 = arith.constant 0 : index
    %3 = vector.load %arg3[%c0_3, %c0_4] : memref<128x128xf32, #tpu.memory_space<vmem>>, vector<128x128xf32>
    %cst = arith.constant dense<0.000000e+00> : vector<1x128xf32>
    %4 = tpu.matmul %2, %3, %cst {dimension_numbers = #tpu.dot_dimension_numbers<[1], [0], [0], [1], [0, 0, 1, 1], [], []>} : vector<1x128xf32>, vector<128x128xf32>, vector<1x128xf32> -> vector<1x128xf32>
    %c0_5 = arith.constant 0 : index
    %c0_6 = arith.constant 0 : index
    %5 = vector.load %arg5[%c0_5, %c0_6] : memref<1x128xf32, #tpu.memory_space<vmem>>, vector<1x128xf32>
    %6 = arith.addf %4, %5 : vector<1x128xf32>
    %c0_7 = arith.constant 0 : index
    %c0_8 = arith.constant 0 : index
    %7 = vector.load %arg12[%c0_7, %c0_8] : memref<128x128xf32, #tpu.memory_space<vmem>>, vector<128x128xf32>
    %cst_9 = arith.constant dense<0.000000e+00> : vector<1x128xf32>
    %8 = tpu.matmul %2, %7, %cst_9 {dimension_numbers = #tpu.dot_dimension_numbers<[1], [0], [0], [1], [0, 0, 1, 1], [], []>} : vector<1x128xf32>, vector<128x128xf32>, vector<1x128xf32> -> vector<1x128xf32>
    %c0_10 = arith.constant 0 : index
    %c0_11 = arith.constant 0 : index
    %9 = vector.load %arg14[%c0_10, %c0_11] : memref<1x128xf32, #tpu.memory_space<vmem>>, vector<1x128xf32>
    %10 = arith.addf %8, %9 : vector<1x128xf32>
    %c0_12 = arith.constant 0 : index
    %c0_13 = arith.constant 0 : index
    %11 = vector.load %arg4[%c0_12, %c0_13] : memref<128x128xbf16, #tpu.memory_space<vmem>>, vector<128x128xbf16>
    %cst_14 = arith.constant dense<0.000000e+00> : vector<2x128xf32>
    %12 = tpu.matmul %1, %11, %cst_14 {dimension_numbers = #tpu.dot_dimension_numbers<[1], [0], [0], [1], [0, 0, 1, 1], [], []>} : vector<2x128xbf16>, vector<128x128xbf16>, vector<2x128xf32> -> vector<2x128xf32>
    %13 = vector.broadcast %6 : vector<1x128xf32> to vector<2x128xf32>
    %14 = arith.addf %12, %13 : vector<2x128xf32>
    %cst_15 = arith.constant 0.000000e+00 : f32
    %15 = vector.broadcast %cst_15 : f32 to vector<2x128xf32>
    %16 = arith.maximumf %14, %15 : vector<2x128xf32>
    %17 = arith.truncf %16 : vector<2x128xf32> to vector<2x128xbf16>
    %c0_16 = arith.constant 0 : index
    %c0_17 = arith.constant 0 : index
    %18 = vector.load %arg6[%c0_16, %c0_17] : memref<128x128xbf16, #tpu.memory_space<vmem>>, vector<128x128xbf16>
    %cst_18 = arith.constant dense<0.000000e+00> : vector<2x128xf32>
    %19 = tpu.matmul %17, %18, %cst_18 {dimension_numbers = #tpu.dot_dimension_numbers<[1], [0], [0], [1], [0, 0, 1, 1], [], []>} : vector<2x128xbf16>, vector<128x128xbf16>, vector<2x128xf32> -> vector<2x128xf32>
    %c0_19 = arith.constant 0 : index
    %c0_20 = arith.constant 0 : index
    %20 = vector.load %arg7[%c0_19, %c0_20] : memref<1x128xf32, #tpu.memory_space<vmem>>, vector<1x128xf32>
    %21 = vector.broadcast %20 : vector<1x128xf32> to vector<2x128xf32>
    %22 = arith.addf %19, %21 : vector<2x128xf32>
    %23 = arith.addf %22, %0 : vector<2x128xf32>
    %24 = arith.truncf %23 : vector<2x128xf32> to vector<2x128xbf16>
    %c0_21 = arith.constant 0 : index
    %c0_22 = arith.constant 0 : index
    %25 = vector.load %arg8[%c0_21, %c0_22] : memref<128x128xbf16, #tpu.memory_space<vmem>>, vector<128x128xbf16>
    %cst_23 = arith.constant dense<0.000000e+00> : vector<2x128xf32>
    %26 = tpu.matmul %24, %25, %cst_23 {dimension_numbers = #tpu.dot_dimension_numbers<[1], [0], [0], [1], [0, 0, 1, 1], [], []>} : vector<2x128xbf16>, vector<128x128xbf16>, vector<2x128xf32> -> vector<2x128xf32>
    %c0_24 = arith.constant 0 : index
    %c0_25 = arith.constant 0 : index
    %27 = vector.load %arg9[%c0_24, %c0_25] : memref<1x128xf32, #tpu.memory_space<vmem>>, vector<1x128xf32>
    %28 = vector.broadcast %27 : vector<1x128xf32> to vector<2x128xf32>
    %29 = arith.addf %26, %28 : vector<2x128xf32>
    %cst_26 = arith.constant 0.000000e+00 : f32
    %30 = vector.broadcast %cst_26 : f32 to vector<2x128xf32>
    %31 = arith.maximumf %29, %30 : vector<2x128xf32>
    %32 = arith.truncf %31 : vector<2x128xf32> to vector<2x128xbf16>
    %c0_27 = arith.constant 0 : index
    %c0_28 = arith.constant 0 : index
    %33 = vector.load %arg10[%c0_27, %c0_28] : memref<128x128xbf16, #tpu.memory_space<vmem>>, vector<128x128xbf16>
    %cst_29 = arith.constant dense<0.000000e+00> : vector<2x128xf32>
    %34 = tpu.matmul %32, %33, %cst_29 {dimension_numbers = #tpu.dot_dimension_numbers<[1], [0], [0], [1], [0, 0, 1, 1], [], []>} : vector<2x128xbf16>, vector<128x128xbf16>, vector<2x128xf32> -> vector<2x128xf32>
    %c0_30 = arith.constant 0 : index
    %c0_31 = arith.constant 0 : index
    %35 = vector.load %arg11[%c0_30, %c0_31] : memref<1x128xf32, #tpu.memory_space<vmem>>, vector<1x128xf32>
    %36 = vector.broadcast %35 : vector<1x128xf32> to vector<2x128xf32>
    %37 = arith.addf %34, %36 : vector<2x128xf32>
    %38 = arith.truncf %37 : vector<2x128xf32> to vector<2x128xbf16>
    %c0_32 = arith.constant 0 : index
    %c0_33 = arith.constant 0 : index
    %39 = vector.load %arg13[%c0_32, %c0_33] : memref<128x128xbf16, #tpu.memory_space<vmem>>, vector<128x128xbf16>
    %cst_34 = arith.constant dense<0.000000e+00> : vector<2x128xf32>
    %40 = tpu.matmul %38, %39, %cst_34 {dimension_numbers = #tpu.dot_dimension_numbers<[1], [0], [0], [1], [0, 0, 1, 1], [], []>} : vector<2x128xbf16>, vector<128x128xbf16>, vector<2x128xf32> -> vector<2x128xf32>
    %41 = vector.broadcast %10 : vector<1x128xf32> to vector<2x128xf32>
    %42 = arith.addf %40, %41 : vector<2x128xf32>
    %cst_35 = arith.constant 0.000000e+00 : f32
    %43 = vector.broadcast %cst_35 : f32 to vector<2x128xf32>
    %44 = arith.maximumf %42, %43 : vector<2x128xf32>
    %45 = arith.truncf %44 : vector<2x128xf32> to vector<2x128xbf16>
    %c0_36 = arith.constant 0 : index
    %c0_37 = arith.constant 0 : index
    %46 = vector.load %arg15[%c0_36, %c0_37] : memref<128x128xbf16, #tpu.memory_space<vmem>>, vector<128x128xbf16>
    %cst_38 = arith.constant dense<0.000000e+00> : vector<2x128xf32>
    %47 = tpu.matmul %45, %46, %cst_38 {dimension_numbers = #tpu.dot_dimension_numbers<[1], [0], [0], [1], [0, 0, 1, 1], [], []>} : vector<2x128xbf16>, vector<128x128xbf16>, vector<2x128xf32> -> vector<2x128xf32>
    %c0_39 = arith.constant 0 : index
    %c0_40 = arith.constant 0 : index
    %48 = vector.load %arg16[%c0_39, %c0_40] : memref<1x128xf32, #tpu.memory_space<vmem>>, vector<1x128xf32>
    %49 = vector.broadcast %48 : vector<1x128xf32> to vector<2x128xf32>
    %50 = arith.addf %47, %49 : vector<2x128xf32>
    %51 = arith.addf %50, %37 : vector<2x128xf32>
    %52 = arith.truncf %51 : vector<2x128xf32> to vector<2x128xbf16>
    %c0_41 = arith.constant 0 : index
    %c0_42 = arith.constant 0 : index
    %53 = vector.load %arg17[%c0_41, %c0_42] : memref<128x128xbf16, #tpu.memory_space<vmem>>, vector<128x128xbf16>
    %cst_43 = arith.constant dense<0.000000e+00> : vector<2x128xf32>
    %54 = tpu.matmul %52, %53, %cst_43 {dimension_numbers = #tpu.dot_dimension_numbers<[1], [0], [0], [1], [0, 0, 1, 1], [], []>} : vector<2x128xbf16>, vector<128x128xbf16>, vector<2x128xf32> -> vector<2x128xf32>
    %c0_44 = arith.constant 0 : index
    %c0_45 = arith.constant 0 : index
    %55 = vector.load %arg18[%c0_44, %c0_45] : memref<1x128xf32, #tpu.memory_space<vmem>>, vector<1x128xf32>
    %56 = vector.broadcast %55 : vector<1x128xf32> to vector<2x128xf32>
    %57 = arith.addf %54, %56 : vector<2x128xf32>
    %cst_46 = arith.constant 0.000000e+00 : f32
    %58 = vector.broadcast %cst_46 : f32 to vector<2x128xf32>
    %59 = arith.maximumf %57, %58 : vector<2x128xf32>
    %60 = arith.truncf %59 : vector<2x128xf32> to vector<2x128xbf16>
    %c0_47 = arith.constant 0 : index
    %c0_48 = arith.constant 0 : index
    %61 = vector.load %arg19[%c0_47, %c0_48] : memref<128x128xbf16, #tpu.memory_space<vmem>>, vector<128x128xbf16>
    %cst_49 = arith.constant dense<0.000000e+00> : vector<2x128xf32>
    %62 = tpu.matmul %60, %61, %cst_49 {dimension_numbers = #tpu.dot_dimension_numbers<[1], [0], [0], [1], [0, 0, 1, 1], [], []>} : vector<2x128xbf16>, vector<128x128xbf16>, vector<2x128xf32> -> vector<2x128xf32>
    %c0_50 = arith.constant 0 : index
    %c0_51 = arith.constant 0 : index
    %63 = vector.load %arg20[%c0_50, %c0_51] : memref<1x128xf32, #tpu.memory_space<vmem>>, vector<1x128xf32>
    %64 = vector.broadcast %63 : vector<1x128xf32> to vector<2x128xf32>
    %65 = arith.addf %62, %64 : vector<2x128xf32>
    %66 = arith.truncf %65 : vector<2x128xf32> to vector<2x128xbf16>
    %c0_52 = arith.constant 0 : index
    %c0_53 = arith.constant 0 : index
    %67 = vector.load %arg21[%c0_52, %c0_53] : memref<2x128xbf16, #tpu.memory_space<vmem>>, vector<2x128xbf16>
    tpu.vector_store %arg21[%c0_52, %c0_53], %66 {strides = array<i32>} : memref<2x128xbf16, #tpu.memory_space<vmem>>, vector<2x128xbf16>,
    return
  }
  func.func @transform_0(%arg0: i32) -> (i32, i32) {
    %c0_i32 = arith.constant 0 : i32
    %c0_i32_0 = arith.constant 0 : i32
    return %arg0, %c0_i32 : i32, i32
  }
  func.func @transform_1(%arg0: i32) -> (i32, i32) {
    %c0_i32 = arith.constant 0 : i32
    %c0_i32_0 = arith.constant 0 : i32
    %c0_i32_1 = arith.constant 0 : i32
    return %c0_i32, %c0_i32_0 : i32, i32
  }
  func.func @transform_2(%arg0: i32) -> (i32, i32) {
    %c0_i32 = arith.constant 0 : i32
    %c0_i32_0 = arith.constant 0 : i32
    %c0_i32_1 = arith.constant 0 : i32
    return %c0_i32, %c0_i32_0 : i32, i32
  }
  func.func @transform_3(%arg0: i32) -> (i32, i32) {
    %c0_i32 = arith.constant 0 : i32
    %c0_i32_0 = arith.constant 0 : i32
    %c0_i32_1 = arith.constant 0 : i32
    return %c0_i32, %c0_i32_0 : i32, i32
  }
  func.func @transform_4(%arg0: i32) -> (i32, i32) {
    %c0_i32 = arith.constant 0 : i32
    %c0_i32_0 = arith.constant 0 : i32
    %c0_i32_1 = arith.constant 0 : i32
    return %c0_i32, %c0_i32_0 : i32, i32
  }
  func.func @transform_5(%arg0: i32) -> (i32, i32) {
    %c0_i32 = arith.constant 0 : i32
    %c0_i32_0 = arith.constant 0 : i32
    %c0_i32_1 = arith.constant 0 : i32
    return %c0_i32, %c0_i32_0 : i32, i32
  }
  func.func @transform_6(%arg0: i32) -> (i32, i32) {
    %c0_i32 = arith.constant 0 : i32
    %c0_i32_0 = arith.constant 0 : i32
    %c0_i32_1 = arith.constant 0 : i32
    return %c0_i32, %c0_i32_0 : i32, i32
  }
  func.func @transform_7(%arg0: i32) -> (i32, i32) {
    %c0_i32 = arith.constant 0 : i32
    %c0_i32_0 = arith.constant 0 : i32
    %c0_i32_1 = arith.constant 0 : i32
    return %c0_i32, %c0_i32_0 : i32, i32
  }
  func.func @transform_8(%arg0: i32) -> (i32, i32) {
    %c0_i32 = arith.constant 0 : i32
    %c0_i32_0 = arith.constant 0 : i32
    %c0_i32_1 = arith.constant 0 : i32
    return %c0_i32, %c0_i32_0 : i32, i32
  }
  func.func @transform_9(%arg0: i32) -> (i32, i32) {
    %c0_i32 = arith.constant 0 : i32
    %c0_i32_0 = arith.constant 0 : i32
    %c0_i32_1 = arith.constant 0 : i32
    return %c0_i32, %c0_i32_0 : i32, i32
  }
  func.func @transform_10(%arg0: i32) -> (i32, i32) {
    %c0_i32 = arith.constant 0 : i32
    %c0_i32_0 = arith.constant 0 : i32
    %c0_i32_1 = arith.constant 0 : i32
    return %c0_i32, %c0_i32_0 : i32, i32
  }
  func.func @transform_11(%arg0: i32) -> (i32, i32) {
    %c0_i32 = arith.constant 0 : i32
    %c0_i32_0 = arith.constant 0 : i32
    %c0_i32_1 = arith.constant 0 : i32
    return %c0_i32, %c0_i32_0 : i32, i32
  }
  func.func @transform_12(%arg0: i32) -> (i32, i32) {
    %c0_i32 = arith.constant 0 : i32
    %c0_i32_0 = arith.constant 0 : i32
    %c0_i32_1 = arith.constant 0 : i32
    return %c0_i32, %c0_i32_0 : i32, i32
  }
  func.func @transform_13(%arg0: i32) -> (i32, i32) {
    %c0_i32 = arith.constant 0 : i32
    %c0_i32_0 = arith.constant 0 : i32
    %c0_i32_1 = arith.constant 0 : i32
    return %c0_i32, %c0_i32_0 : i32, i32
  }
  func.func @transform_14(%arg0: i32) -> (i32, i32) {
    %c0_i32 = arith.constant 0 : i32
    %c0_i32_0 = arith.constant 0 : i32
    %c0_i32_1 = arith.constant 0 : i32
    return %c0_i32, %c0_i32_0 : i32, i32
  }
  func.func @transform_15(%arg0: i32) -> (i32, i32) {
    %c0_i32 = arith.constant 0 : i32
    %c0_i32_0 = arith.constant 0 : i32
    %c0_i32_1 = arith.constant 0 : i32
    return %c0_i32, %c0_i32_0 : i32, i32
  }
  func.func @transform_16(%arg0: i32) -> (i32, i32) {
    %c0_i32 = arith.constant 0 : i32
    %c0_i32_0 = arith.constant 0 : i32
    %c0_i32_1 = arith.constant 0 : i32
    return %c0_i32, %c0_i32_0 : i32, i32
  }
  func.func @transform_17(%arg0: i32) -> (i32, i32) {
    %c0_i32 = arith.constant 0 : i32
    %c0_i32_0 = arith.constant 0 : i32
    %c0_i32_1 = arith.constant 0 : i32
    return %c0_i32, %c0_i32_0 : i32, i32
  }
  func.func @transform_18(%arg0: i32) -> (i32, i32) {
    %c0_i32 = arith.constant 0 : i32
    %c0_i32_0 = arith.constant 0 : i32
    %c0_i32_1 = arith.constant 0 : i32
    return %c0_i32, %c0_i32_0 : i32, i32
  }
  func.func @transform_19(%arg0: i32) -> (i32, i32) {
    %c0_i32 = arith.constant 0 : i32
    %c0_i32_0 = arith.constant 0 : i32
    %c0_i32_1 = arith.constant 0 : i32
    return %c0_i32, %c0_i32_0 : i32, i32
  }
  func.func @transform_20(%arg0: i32) -> (i32, i32) {
    %c0_i32 = arith.constant 0 : i32
    %c0_i32_0 = arith.constant 0 : i32
    return %arg0, %c0_i32 : i32, i32
  }
}

</mosaic_0001>

<llo_original>
// kernel: simple_decoder_forward.1
$region0: #{simple_decoder_forward.1}
  #allocation0 [shape = 'u32[]', space=smem, size = 0x4, offset = 0x4, fixed_abs, tag = 'smem constant byte address 0x4 - core index']
  #allocation1 [shape = 'u32[72,128]{1,0:T(1,128)}', space=vmem, size = 0x9000, scoped, tag = 'internal scratch']
  %s0 = inlined_call_operand.vmem [shape: f32[2,128], index: 0, kind: input, shape index: {}]
  %s1 = inlined_call_operand.vmem [shape: f32[1,128], index: 1, kind: input, shape index: {}]
  %s2 = inlined_call_operand.hbm [shape: f32[128,128], index: 2, kind: input, shape index: {}]
  %s3 = inlined_call_operand.hbm [shape: bf16[128,128], index: 3, kind: input, shape index: {}]
  %s4 = inlined_call_operand.vmem [shape: f32[1,128], index: 4, kind: input, shape index: {}]
  %s5 = inlined_call_operand.hbm [shape: bf16[128,128], index: 5, kind: input, shape index: {}]
  %s6 = inlined_call_operand.vmem [shape: f32[1,128], index: 6, kind: input, shape index: {}]
  %s7 = inlined_call_operand.hbm [shape: bf16[128,128], index: 7, kind: input, shape index: {}]
  %s8 = inlined_call_operand.vmem [shape: f32[1,128], index: 8, kind: input, shape index: {}]
  %s9 = inlined_call_operand.hbm [shape: bf16[128,128], index: 9, kind: input, shape index: {}]
  %s10 = inlined_call_operand.vmem [shape: f32[1,128], index: 10, kind: input, shape index: {}]
  %s11 = inlined_call_operand.hbm [shape: f32[128,128], index: 11, kind: input, shape index: {}]
  %s12 = inlined_call_operand.hbm [shape: bf16[128,128], index: 12, kind: input, shape index: {}]
  %s13 = inlined_call_operand.vmem [shape: f32[1,128], index: 13, kind: input, shape index: {}]
  %s14 = inlined_call_operand.hbm [shape: bf16[128,128], index: 14, kind: input, shape index: {}]
  %s15 = inlined_call_operand.vmem [shape: f32[1,128], index: 15, kind: input, shape index: {}]
  %s16 = inlined_call_operand.hbm [shape: bf16[128,128], index: 16, kind: input, shape index: {}]
  %s17 = inlined_call_operand.vmem [shape: f32[1,128], index: 17, kind: input, shape index: {}]
  %s18 = inlined_call_operand.hbm [shape: bf16[128,128], index: 18, kind: input, shape index: {}]
  %s19 = inlined_call_operand.vmem [shape: f32[1,128], index: 19, kind: input, shape index: {}]
  %s20 = inlined_call_operand.vmem [shape: bf16[2,128], index: 20, kind: output, shape index: {}]
  %s21 = sld [smem:[#allocation0]]
  $region130: #{simple_decoder_forward.1} parent=0
    _
  %s23 = ssub.s32 1, %s21
  %s24 = scalar_select 0, %s23, %s21
  $region1: #{simple_decoder_forward.1} parent=0
    #allocation2 [shape = 'u8[65536]{0}', space=vmem, size = 0x10000, scoped, tag = 'input window, operand 2, single buffered']
    #allocation3 [shape = 's32[1]{0}', space=sflag, size = 0x4, scoped, tag = 'scoped memory for simple_decoder_forward.1']
    #allocation4 [shape = 'u8[32768]{0}', space=vmem, size = 0x8000, scoped, tag = 'input window, operand 3, single buffered']
    #allocation5 [shape = 's32[1]{0}', space=sflag, size = 0x4, scoped, tag = 'scoped memory for simple_decoder_forward.1']
    #allocation6 [shape = 'u8[32768]{0}', space=vmem, size = 0x8000, scoped, tag = 'input window, operand 5, single buffered']
    #allocation7 [shape = 'u8[32768]{0}', space=vmem, size = 0x8000, scoped, tag = 'input window, operand 7, single buffered']
    #allocation8 [shape = 's32[1]{0}', space=sflag, size = 0x4, scoped, tag = 'scoped memory for simple_decoder_forward.1']
    #allocation9 [shape = 'u8[32768]{0}', space=vmem, size = 0x8000, scoped, tag = 'input window, operand 9, single buffered']
    #allocation10 [shape = 'u8[65536]{0}', space=vmem, size = 0x10000, scoped, tag = 'input window, operand 11, single buffered']
    #allocation11 [shape = 's32[1]{0}', space=sflag, size = 0x4, scoped, tag = 'scoped memory for simple_decoder_forward.1']
    #allocation12 [shape = 'u8[32768]{0}', space=vmem, size = 0x8000, scoped, tag = 'input window, operand 12, single buffered']
    #allocation13 [shape = 'u8[32768]{0}', space=vmem, size = 0x8000, scoped, tag = 'input window, operand 14, single buffered']
    #allocation14 [shape = 's32[1]{0}', space=sflag, size = 0x4, scoped, tag = 'scoped memory for simple_decoder_forward.1']
    #allocation15 [shape = 'u8[32768]{0}', space=vmem, size = 0x8000, scoped, tag = 'input window, operand 16, single buffered']
    #allocation16 [shape = 'u8[32768]{0}', space=vmem, size = 0x8000, scoped, tag = 'input window, operand 18, single buffered']
    #allocation17 [shape = 's32[1]{0}', space=sflag, size = 0x4, scoped, tag = 'scoped memory for simple_decoder_forward.1']
    %25 = vsyncpa [#allocation3], 0
    %26 = vsyncpa [#allocation5], 0
    %27 = vsyncpa [#allocation8], 0
    %28 = vsyncpa [#allocation11], 0
    %29 = vsyncpa [#allocation14], 0
    %30 = vsyncpa [#allocation17], 0
    // Predicated region
    $region2: #{simple_decoder_forward.1} parent=1 // pred_check
      _
    $region3: #{simple_decoder_forward.1} parent=1 // pred_check_branch
      %32 = sbr.rel (0) target = $region5
    $region4: #{simple_decoder_forward.1} parent=1 // pred_region
      _
    $region5: #{simple_decoder_forward.1} parent=1 // pred_fallthru
      _
    // Predicated region
    $region6: #{simple_decoder_forward.1} parent=1 // pred_check
      _
    $region7: #{simple_decoder_forward.1} parent=1 // pred_check_branch
      %34 = sbr.rel (0) target = $region9
    $region8: #{simple_decoder_forward.1} parent=1 // pred_region
      _
    $region9: #{simple_decoder_forward.1} parent=1 // pred_fallthru
      _
    // Predicated region
    $region10: #{simple_decoder_forward.1} parent=1 // pred_check
      _
    $region11: #{simple_decoder_forward.1} parent=1 // pred_check_branch
      %36 = sbr.rel (0) target = $region13
    $region12: #{simple_decoder_forward.1} parent=1 // pred_region
      %38 = vsyncadd [#allocation3], 0
      %s39 = sshll.u32 %s2, 4
      %s40 = int_to_ptr.hbm [resolvable:$true] %s39
      %s41 = sshll.u32 [#allocation2], 4
      %s42 = int_to_ptr.vmem [resolvable:$true] %s41
      %47 = dma.hbm_to_vmem [thread:$0]  %s40, 2048, %s42, [#allocation3], 128, 128, 8
    $region13: #{simple_decoder_forward.1} parent=1 // pred_fallthru
      _
    // Predicated region
    $region14: #{simple_decoder_forward.1} parent=1 // pred_check
      _
    $region15: #{simple_decoder_forward.1} parent=1 // pred_check_branch
      %49 = sbr.rel (0) target = $region17
    $region16: #{simple_decoder_forward.1} parent=1 // pred_region
      %51 = vsyncadd [#allocation5], 0
      %s52 = sshll.u32 %s3, 4
      %s53 = int_to_ptr.hbm [resolvable:$true] %s52
      %s54 = sshll.u32 [#allocation4], 4
      %s55 = int_to_ptr.vmem [resolvable:$true] %s54
      %60 = dma.hbm_to_vmem [thread:$0]  %s53, 1024, %s55, [#allocation5], 64, 64, 4
    $region17: #{simple_decoder_forward.1} parent=1 // pred_fallthru
      _
    // Predicated region
    $region18: #{simple_decoder_forward.1} parent=1 // pred_check
      _
    $region19: #{simple_decoder_forward.1} parent=1 // pred_check_branch
      %62 = sbr.rel (0) target = $region21
    $region20: #{simple_decoder_forward.1} parent=1 // pred_region
      _
    $region21: #{simple_decoder_forward.1} parent=1 // pred_fallthru
      _
    // Predicated region
    $region22: #{simple_decoder_forward.1} parent=1 // pred_check
      _
    $region23: #{simple_decoder_forward.1} parent=1 // pred_check_branch
      %64 = sbr.rel (0) target = $region25
    $region24: #{simple_decoder_forward.1} parent=1 // pred_region
      %66 = vsyncadd [#allocation5], 0
      %s67 = sshll.u32 %s5, 4
      %s68 = int_to_ptr.hbm [resolvable:$true] %s67
      %s69 = sshll.u32 [#allocation6], 4
      %s70 = int_to_ptr.vmem [resolvable:$true] %s69
      %75 = dma.hbm_to_vmem [thread:$0]  %s68, 1024, %s70, [#allocation5], 64, 64, 4
    $region25: #{simple_decoder_forward.1} parent=1 // pred_fallthru
      _
    // Predicated region
    $region26: #{simple_decoder_forward.1} parent=1 // pred_check
      _
    $region27: #{simple_decoder_forward.1} parent=1 // pred_check_branch
      %77 = sbr.rel (0) target = $region29
    $region28: #{simple_decoder_forward.1} parent=1 // pred_region
      _
    $region29: #{simple_decoder_forward.1} parent=1 // pred_fallthru
      _
    // Predicated region
    $region30: #{simple_decoder_forward.1} parent=1 // pred_check
      _
    $region31: #{simple_decoder_forward.1} parent=1 // pred_check_branch
      %79 = sbr.rel (0) target = $region33
    $region32: #{simple_decoder_forward.1} parent=1 // pred_region
      %81 = vsyncadd [#allocation8], 0
      %s82 = sshll.u32 %s7, 4
      %s83 = int_to_ptr.hbm [resolvable:$true] %s82
      %s84 = sshll.u32 [#allocation7], 4
      %s85 = int_to_ptr.vmem [resolvable:$true] %s84
      %90 = dma.hbm_to_vmem [thread:$0]  %s83, 1024, %s85, [#allocation8], 64, 64, 4
    $region33: #{simple_decoder_forward.1} parent=1 // pred_fallthru
      _
    // Predicated region
    $region34: #{simple_decoder_forward.1} parent=1 // pred_check
      _
    $region35: #{simple_decoder_forward.1} parent=1 // pred_check_branch
      %92 = sbr.rel (0) target = $region37
    $region36: #{simple_decoder_forward.1} parent=1 // pred_region
      _
    $region37: #{simple_decoder_forward.1} parent=1 // pred_fallthru
      _
    // Predicated region
    $region38: #{simple_decoder_forward.1} parent=1 // pred_check
      _
    $region39: #{simple_decoder_forward.1} parent=1 // pred_check_branch
      %94 = sbr.rel (0) target = $region41
    $region40: #{simple_decoder_forward.1} parent=1 // pred_region
      %96 = vsyncadd [#allocation8], 0
      %s97 = sshll.u32 %s9, 4
      %s98 = int_to_ptr.hbm [resolvable:$true] %s97
      %s99 = sshll.u32 [#allocation9], 4
      %s100 = int_to_ptr.vmem [resolvable:$true] %s99
      %105 = dma.hbm_to_vmem [thread:$0]  %s98, 1024, %s100, [#allocation8], 64, 64, 4
    $region41: #{simple_decoder_forward.1} parent=1 // pred_fallthru
      _
    // Predicated region
    $region42: #{simple_decoder_forward.1} parent=1 // pred_check
      _
    $region43: #{simple_decoder_forward.1} parent=1 // pred_check_branch
      %107 = sbr.rel (0) target = $region45
    $region44: #{simple_decoder_forward.1} parent=1 // pred_region
      _
    $region45: #{simple_decoder_forward.1} parent=1 // pred_fallthru
      _
    // Predicated region
    $region46: #{simple_decoder_forward.1} parent=1 // pred_check
      _
    $region47: #{simple_decoder_forward.1} parent=1 // pred_check_branch
      %109 = sbr.rel (0) target = $region49
    $region48: #{simple_decoder_forward.1} parent=1 // pred_region
      %111 = vsyncadd [#allocation11], 0
      %s112 = sshll.u32 %s11, 4
      %s113 = int_to_ptr.hbm [resolvable:$true] %s112
      %s114 = sshll.u32 [#allocation10], 4
      %s115 = int_to_ptr.vmem [resolvable:$true] %s114
      %120 = dma.hbm_to_vmem [thread:$0]  %s113, 2048, %s115, [#allocation11], 128, 128, 8
    $region49: #{simple_decoder_forward.1} parent=1 // pred_fallthru
      _
    // Predicated region
    $region50: #{simple_decoder_forward.1} parent=1 // pred_check
      _
    $region51: #{simple_decoder_forward.1} parent=1 // pred_check_branch
      %122 = sbr.rel (0) target = $region53
    $region52: #{simple_decoder_forward.1} parent=1 // pred_region
      %124 = vsyncadd [#allocation11], 0
      %s125 = sshll.u32 %s12, 4
      %s126 = int_to_ptr.hbm [resolvable:$true] %s125
      %s127 = sshll.u32 [#allocation12], 4
      %s128 = int_to_ptr.vmem [resolvable:$true] %s127
      %133 = dma.hbm_to_vmem [thread:$0]  %s126, 1024, %s128, [#allocation11], 64, 64, 4
    $region53: #{simple_decoder_forward.1} parent=1 // pred_fallthru
      _
    // Predicated region
    $region54: #{simple_decoder_forward.1} parent=1 // pred_check
      _
    $region55: #{simple_decoder_forward.1} parent=1 // pred_check_branch
      %135 = sbr.rel (0) target = $region57
    $region56: #{simple_decoder_forward.1} parent=1 // pred_region
      _
    $region57: #{simple_decoder_forward.1} parent=1 // pred_fallthru
      _
    // Predicated region
    $region58: #{simple_decoder_forward.1} parent=1 // pred_check
      _
    $region59: #{simple_decoder_forward.1} parent=1 // pred_check_branch
      %137 = sbr.rel (0) target = $region61
    $region60: #{simple_decoder_forward.1} parent=1 // pred_region
      %139 = vsyncadd [#allocation14], 0
      %s140 = sshll.u32 %s14, 4
      %s141 = int_to_ptr.hbm [resolvable:$true] %s140
      %s142 = sshll.u32 [#allocation13], 4
      %s143 = int_to_ptr.vmem [resolvable:$true] %s142
      %148 = dma.hbm_to_vmem [thread:$0]  %s141, 1024, %s143, [#allocation14], 64, 64, 4
    $region61: #{simple_decoder_forward.1} parent=1 // pred_fallthru
      _
    // Predicated region
    $region62: #{simple_decoder_forward.1} parent=1 // pred_check
      _
    $region63: #{simple_decoder_forward.1} parent=1 // pred_check_branch
      %150 = sbr.rel (0) target = $region65
    $region64: #{simple_decoder_forward.1} parent=1 // pred_region
      _
    $region65: #{simple_decoder_forward.1} parent=1 // pred_fallthru
      _
    // Predicated region
    $region66: #{simple_decoder_forward.1} parent=1 // pred_check
      _
    $region67: #{simple_decoder_forward.1} parent=1 // pred_check_branch
      %152 = sbr.rel (0) target = $region69
    $region68: #{simple_decoder_forward.1} parent=1 // pred_region
      %154 = vsyncadd [#allocation14], 0
      %s155 = sshll.u32 %s16, 4
      %s156 = int_to_ptr.hbm [resolvable:$true] %s155
      %s157 = sshll.u32 [#allocation15], 4
      %s158 = int_to_ptr.vmem [resolvable:$true] %s157
      %163 = dma.hbm_to_vmem [thread:$0]  %s156, 1024, %s158, [#allocation14], 64, 64, 4
    $region69: #{simple_decoder_forward.1} parent=1 // pred_fallthru
      _
    // Predicated region
    $region70: #{simple_decoder_forward.1} parent=1 // pred_check
      _
    $region71: #{simple_decoder_forward.1} parent=1 // pred_check_branch
      %165 = sbr.rel (0) target = $region73
    $region72: #{simple_decoder_forward.1} parent=1 // pred_region
      _
    $region73: #{simple_decoder_forward.1} parent=1 // pred_fallthru
      _
    // Predicated region
    $region74: #{simple_decoder_forward.1} parent=1 // pred_check
      _
    $region75: #{simple_decoder_forward.1} parent=1 // pred_check_branch
      %167 = sbr.rel (0) target = $region77
    $region76: #{simple_decoder_forward.1} parent=1 // pred_region
      %169 = vsyncadd [#allocation17], 0
      %s170 = sshll.u32 %s18, 4
      %s171 = int_to_ptr.hbm [resolvable:$true] %s170
      %s172 = sshll.u32 [#allocation16], 4
      %s173 = int_to_ptr.vmem [resolvable:$true] %s172
      %178 = dma.hbm_to_vmem [thread:$0]  %s171, 1024, %s173, [#allocation17], 64, 64, 4
    $region77: #{simple_decoder_forward.1} parent=1 // pred_fallthru
      _
    // Predicated region
    $region78: #{simple_decoder_forward.1} parent=1 // pred_check
      _
    $region79: #{simple_decoder_forward.1} parent=1 // pred_check_branch
      %180 = sbr.rel (0) target = $region81
    $region80: #{simple_decoder_forward.1} parent=1 // pred_region
      _
    $region81: #{simple_decoder_forward.1} parent=1 // pred_fallthru
      _
    // Predicated region
    $region82: #{simple_decoder_forward.1} parent=1 // pred_check
      _
    $region83: #{simple_decoder_forward.1} parent=1 // pred_check_branch
      %182 = sbr.rel (0) target = $region85
    $region84: #{simple_decoder_forward.1} parent=1 // pred_region
      %184 = dma.done [#allocation3], 2048
    $region85: #{simple_decoder_forward.1} parent=1 // pred_fallthru
      _
    // Predicated region
    $region86: #{simple_decoder_forward.1} parent=1 // pred_check
      _
    $region87: #{simple_decoder_forward.1} parent=1 // pred_check_branch
      %186 = sbr.rel (0) target = $region89
    $region88: #{simple_decoder_forward.1} parent=1 // pred_region
      %188 = dma.done [#allocation5], 1024
    $region89: #{simple_decoder_forward.1} parent=1 // pred_fallthru
      _
    // Predicated region
    $region90: #{simple_decoder_forward.1} parent=1 // pred_check
      _
    $region91: #{simple_decoder_forward.1} parent=1 // pred_check_branch
      %190 = sbr.rel (0) target = $region93
    $region92: #{simple_decoder_forward.1} parent=1 // pred_region
      %192 = dma.done [#allocation5], 1024
    $region93: #{simple_decoder_forward.1} parent=1 // pred_fallthru
      _
    // Predicated region
    $region94: #{simple_decoder_forward.1} parent=1 // pred_check
      _
    $region95: #{simple_decoder_forward.1} parent=1 // pred_check_branch
      %194 = sbr.rel (0) target = $region97
    $region96: #{simple_decoder_forward.1} parent=1 // pred_region
      %196 = dma.done [#allocation8], 1024
    $region97: #{simple_decoder_forward.1} parent=1 // pred_fallthru
      _
    // Predicated region
    $region98: #{simple_decoder_forward.1} parent=1 // pred_check
      _
    $region99: #{simple_decoder_forward.1} parent=1 // pred_check_branch
      %198 = sbr.rel (0) target = $region101
    $region100: #{simple_decoder_forward.1} parent=1 // pred_region
      %200 = dma.done [#allocation8], 1024
    $region101: #{simple_decoder_forward.1} parent=1 // pred_fallthru
      _
    // Predicated region
    $region102: #{simple_decoder_forward.1} parent=1 // pred_check
      _
    $region103: #{simple_decoder_forward.1} parent=1 // pred_check_branch
      %202 = sbr.rel (0) target = $region105
    $region104: #{simple_decoder_forward.1} parent=1 // pred_region
      %204 = dma.done [#allocation11], 2048
    $region105: #{simple_decoder_forward.1} parent=1 // pred_fallthru
      _
    // Predicated region
    $region106: #{simple_decoder_forward.1} parent=1 // pred_check
      _
    $region107: #{simple_decoder_forward.1} parent=1 // pred_check_branch
      %206 = sbr.rel (0) target = $region109
    $region108: #{simple_decoder_forward.1} parent=1 // pred_region
      %208 = dma.done [#allocation11], 1024
    $region109: #{simple_decoder_forward.1} parent=1 // pred_fallthru
      _
    // Predicated region
    $region110: #{simple_decoder_forward.1} parent=1 // pred_check
      _
    $region111: #{simple_decoder_forward.1} parent=1 // pred_check_branch
      %210 = sbr.rel (0) target = $region113
    $region112: #{simple_decoder_forward.1} parent=1 // pred_region
      %212 = dma.done [#allocation14], 1024
    $region113: #{simple_decoder_forward.1} parent=1 // pred_fallthru
      _
    // Predicated region
    $region114: #{simple_decoder_forward.1} parent=1 // pred_check
      _
    $region115: #{simple_decoder_forward.1} parent=1 // pred_check_branch
      %214 = sbr.rel (0) target = $region117
    $region116: #{simple_decoder_forward.1} parent=1 // pred_region
      %216 = dma.done [#allocation14], 1024
    $region117: #{simple_decoder_forward.1} parent=1 // pred_fallthru
      _
    // Predicated region
    $region118: #{simple_decoder_forward.1} parent=1 // pred_check
      _
    $region119: #{simple_decoder_forward.1} parent=1 // pred_check_branch
      %218 = sbr.rel (0) target = $region121
    $region120: #{simple_decoder_forward.1} parent=1 // pred_region
      %220 = dma.done [#allocation17], 1024
    $region121: #{simple_decoder_forward.1} parent=1 // pred_fallthru
      _
    %v221 = vld [vmem:[%s0] sm:$0x3]
    %v222 = vpack.c.bf16 %v221, %v221
    %v223 = vld [vmem:[%s1] sm:$0x1]
    %v224 = vld [vmem:[#allocation2] sm:$0xff]
    %v225 = vld [vmem:[#allocation2 + $0x8] sm:$0xff]
    %v226 = vld [vmem:[#allocation2 + $0x10] sm:$0xff]
    %v227 = vld [vmem:[#allocation2 + $0x18] sm:$0xff]
    %v228 = vld [vmem:[#allocation2 + $0x20] sm:$0xff]
    %v229 = vld [vmem:[#allocation2 + $0x28] sm:$0xff]
    %v230 = vld [vmem:[#allocation2 + $0x30] sm:$0xff]
    %v231 = vld [vmem:[#allocation2 + $0x38] sm:$0xff]
    %v232 = vld [vmem:[#allocation2 + $0x40] sm:$0xff]
    %v233 = vld [vmem:[#allocation2 + $0x48] sm:$0xff]
    %v234 = vld [vmem:[#allocation2 + $0x50] sm:$0xff]
    %v235 = vld [vmem:[#allocation2 + $0x58] sm:$0xff]
    %v236 = vld [vmem:[#allocation2 + $0x60] sm:$0xff]
    %v237 = vld [vmem:[#allocation2 + $0x68] sm:$0xff]
    %v238 = vld [vmem:[#allocation2 + $0x70] sm:$0xff]
    %v239 = vld [vmem:[#allocation2 + $0x78] sm:$0xff]
    %v240 = vld [vmem:[%s4] sm:$0x1]
    %241 = vmatpush.msra.mxu0 %v239
    %242 = vmatpush.msra.mxu0 %v238
    %243 = vmatpush.msra.mxu0 %v237
    %244 = vmatpush.msra.mxu0 %v236
    %245 = vmatpush.msra.mxu0 %v235
    %246 = vmatpush.msra.mxu0 %v234
    %247 = vmatpush.msra.mxu0 %v233
    %248 = vmatpush.msra.mxu0 %v232
    %249 = vmatpush.msra.mxu0 %v231
    %250 = vmatpush.msra.mxu0 %v230
    %251 = vmatpush.msra.mxu0 %v229
    %252 = vmatpush.msra.mxu0 %v228
    %253 = vmatpush.msra.mxu0 %v227
    %254 = vmatpush.msra.mxu0 %v226
    %255 = vmatpush.msra.mxu0 %v225
    %256 = vmatpush.msra.mxu0 %v224
    %257 = vmatmul.f32.gmra.mxu0 %v223
    %v258 = vpop.f32.mrf.mxu0
    %v259 = vadd.f32 %v240, %v258
    %260 = vdwg.mxu0
    %v261 = vld [vmem:[#allocation10] sm:$0xff]
    %v262 = vld [vmem:[#allocation10 + $0x8] sm:$0xff]
    %v263 = vld [vmem:[#allocation10 + $0x10] sm:$0xff]
    %v264 = vld [vmem:[#allocation10 + $0x18] sm:$0xff]
    %v265 = vld [vmem:[#allocation10 + $0x20] sm:$0xff]
    %v266 = vld [vmem:[#allocation10 + $0x28] sm:$0xff]
    %v267 = vld [vmem:[#allocation10 + $0x30] sm:$0xff]
    %v268 = vld [vmem:[#allocation10 + $0x38] sm:$0xff]
    %v269 = vld [vmem:[#allocation10 + $0x40] sm:$0xff]
    %v270 = vld [vmem:[#allocation10 + $0x48] sm:$0xff]
    %v271 = vld [vmem:[#allocation10 + $0x50] sm:$0xff]
    %v272 = vld [vmem:[#allocation10 + $0x58] sm:$0xff]
    %v273 = vld [vmem:[#allocation10 + $0x60] sm:$0xff]
    %v274 = vld [vmem:[#allocation10 + $0x68] sm:$0xff]
    %v275 = vld [vmem:[#allocation10 + $0x70] sm:$0xff]
    %v276 = vld [vmem:[#allocation10 + $0x78] sm:$0xff]
    %v277 = vld [vmem:[%s13] sm:$0x1]
    %278 = vmatpush.msra.mxu0 %v276
    %279 = vmatpush.msra.mxu0 %v275
    %280 = vmatpush.msra.mxu0 %v274
    %281 = vmatpush.msra.mxu0 %v273
    %282 = vmatpush.msra.mxu0 %v272
    %283 = vmatpush.msra.mxu0 %v271
    %284 = vmatpush.msra.mxu0 %v270
    %285 = vmatpush.msra.mxu0 %v269
    %286 = vmatpush.msra.mxu0 %v268
    %287 = vmatpush.msra.mxu0 %v267
    %288 = vmatpush.msra.mxu0 %v266
    %289 = vmatpush.msra.mxu0 %v265
    %290 = vmatpush.msra.mxu0 %v264
    %291 = vmatpush.msra.mxu0 %v263
    %292 = vmatpush.msra.mxu0 %v262
    %293 = vmatpush.msra.mxu0 %v261
    %294 = vmatmul.f32.gmra.mxu0 %v223
    %v295 = vpop.f32.mrf.mxu0
    %v296 = vadd.f32 %v277, %v295
    %297 = vdwg.mxu0
    %v298 = vld [vmem:[#allocation4] sm:$0xf]
    %v299 = vld [vmem:[#allocation4 + $0x4] sm:$0xf]
    %v300 = vld [vmem:[#allocation4 + $0x8] sm:$0xf]
    %v301 = vld [vmem:[#allocation4 + $0xc] sm:$0xf]
    %v302 = vld [vmem:[#allocation4 + $0x10] sm:$0xf]
    %v303 = vld [vmem:[#allocation4 + $0x14] sm:$0xf]
    %v304 = vld [vmem:[#allocation4 + $0x18] sm:$0xf]
    %v305 = vld [vmem:[#allocation4 + $0x1c] sm:$0xf]
    %v306 = vld [vmem:[#allocation4 + $0x20] sm:$0xf]
    %v307 = vld [vmem:[#allocation4 + $0x24] sm:$0xf]
    %v308 = vld [vmem:[#allocation4 + $0x28] sm:$0xf]
    %v309 = vld [vmem:[#allocation4 + $0x2c] sm:$0xf]
    %v310 = vld [vmem:[#allocation4 + $0x30] sm:$0xf]
    %v311 = vld [vmem:[#allocation4 + $0x34] sm:$0xf]
    %v312 = vld [vmem:[#allocation4 + $0x38] sm:$0xf]
    %v313 = vld [vmem:[#allocation4 + $0x3c] sm:$0xf]
    %v314 = vperm.slane %v259, 0
    %v331 = vunpack.c.l.b16 %v298
    %v332 = vunpack.c.l.b16 %v299
    %v333 = vunpack.c.l.b16 %v300
    %v334 = vunpack.c.l.b16 %v301
    %v335 = vunpack.c.l.b16 %v302
    %v336 = vunpack.c.l.b16 %v303
    %v337 = vunpack.c.l.b16 %v304
    %v338 = vunpack.c.l.b16 %v305
    %v339 = vunpack.c.l.b16 %v306
    %v340 = vunpack.c.l.b16 %v307
    %v341 = vunpack.c.l.b16 %v308
    %v342 = vunpack.c.l.b16 %v309
    %v343 = vunpack.c.l.b16 %v310
    %v344 = vunpack.c.l.b16 %v311
    %v345 = vunpack.c.l.b16 %v312
    %v346 = vunpack.c.l.b16 %v313
    %v347 = vpack.c.b16 %v332, %v331
    %v348 = vpack.c.b16 %v334, %v333
    %v349 = vpack.c.b16 %v336, %v335
    %v350 = vpack.c.b16 %v338, %v337
    %v351 = vpack.c.b16 %v340, %v339
    %v352 = vpack.c.b16 %v342, %v341
    %v353 = vpack.c.b16 %v344, %v343
    %v354 = vpack.c.b16 %v346, %v345
    %363 = vmatpush.bf16.msra.mxu0 %v354
    %364 = vmatpush.bf16.msra.mxu0 %v353
    %365 = vmatpush.bf16.msra.mxu0 %v352
    %366 = vmatpush.bf16.msra.mxu0 %v351
    %367 = vmatpush.bf16.msra.mxu0 %v350
    %368 = vmatpush.bf16.msra.mxu0 %v349
    %369 = vmatpush.bf16.msra.mxu0 %v348
    %370 = vmatpush.bf16.msra.mxu0 %v347
    %371 = vmatmul.bf16.gmra.mxu0 %v222
    %v372 = vpop.f32.mrf.mxu0
    %v373 = vadd.f32 %v314, %v372
    %v374 = vpop.f32.mrf.mxu0
    %375 = vdwg.mxu0
    %v376 = vmax.f32 %v373, 0.0
    %v377 = vpack.c.bf16 %v376, %v376
    %v378 = vld [vmem:[#allocation6] sm:$0xf]
    %v379 = vld [vmem:[#allocation6 + $0x4] sm:$0xf]
    %v380 = vld [vmem:[#allocation6 + $0x8] sm:$0xf]
    %v381 = vld [vmem:[#allocation6 + $0xc] sm:$0xf]
    %v382 = vld [vmem:[#allocation6 + $0x10] sm:$0xf]
    %v383 = vld [vmem:[#allocation6 + $0x14] sm:$0xf]
    %v384 = vld [vmem:[#allocation6 + $0x18] sm:$0xf]
    %v385 = vld [vmem:[#allocation6 + $0x1c] sm:$0xf]
    %v386 = vld [vmem:[#allocation6 + $0x20] sm:$0xf]
    %v387 = vld [vmem:[#allocation6 + $0x24] sm:$0xf]
    %v388 = vld [vmem:[#allocation6 + $0x28] sm:$0xf]
    %v389 = vld [vmem:[#allocation6 + $0x2c] sm:$0xf]
    %v390 = vld [vmem:[#allocation6 + $0x30] sm:$0xf]
    %v391 = vld [vmem:[#allocation6 + $0x34] sm:$0xf]
    %v392 = vld [vmem:[#allocation6 + $0x38] sm:$0xf]
    %v393 = vld [vmem:[#allocation6 + $0x3c] sm:$0xf]
    %v394 = vld [vmem:[%s6] sm:$0x1]
    %v396 = vperm.slane %v394, 0
    %v414 = vunpack.c.l.b16 %v378
    %v415 = vunpack.c.l.b16 %v379
    %v416 = vunpack.c.l.b16 %v380
    %v417 = vunpack.c.l.b16 %v381
    %v418 = vunpack.c.l.b16 %v382
    %v419 = vunpack.c.l.b16 %v383
    %v420 = vunpack.c.l.b16 %v384
    %v421 = vunpack.c.l.b16 %v385
    %v422 = vunpack.c.l.b16 %v386
    %v423 = vunpack.c.l.b16 %v387
    %v424 = vunpack.c.l.b16 %v388
    %v425 = vunpack.c.l.b16 %v389
    %v426 = vunpack.c.l.b16 %v390
    %v427 = vunpack.c.l.b16 %v391
    %v428 = vunpack.c.l.b16 %v392
    %v429 = vunpack.c.l.b16 %v393
    %v430 = vpack.c.b16 %v415, %v414
    %v431 = vpack.c.b16 %v417, %v416
    %v432 = vpack.c.b16 %v419, %v418
    %v433 = vpack.c.b16 %v421, %v420
    %v434 = vpack.c.b16 %v423, %v422
    %v435 = vpack.c.b16 %v425, %v424
    %v436 = vpack.c.b16 %v427, %v426
    %v437 = vpack.c.b16 %v429, %v428
    %446 = vmatpush.bf16.msra.mxu0 %v437
    %447 = vmatpush.bf16.msra.mxu0 %v436
    %448 = vmatpush.bf16.msra.mxu0 %v435
    %449 = vmatpush.bf16.msra.mxu0 %v434
    %450 = vmatpush.bf16.msra.mxu0 %v433
    %451 = vmatpush.bf16.msra.mxu0 %v432
    %452 = vmatpush.bf16.msra.mxu0 %v431
    %453 = vmatpush.bf16.msra.mxu0 %v430
    %454 = vmatmul.bf16.gmra.mxu0 %v377
    %v455 = vpop.f32.mrf.mxu0
    %v456 = vadd.f32 %v396, %v455
    %v457 = vpop.f32.mrf.mxu0
    %458 = vdwg.mxu0
    %v459 = vadd.f32 %v456, %v221
    %v460 = vpack.c.bf16 %v459, %v459
    %v461 = vld [vmem:[#allocation7] sm:$0xf]
    %v462 = vld [vmem:[#allocation7 + $0x4] sm:$0xf]
    %v463 = vld [vmem:[#allocation7 + $0x8] sm:$0xf]
    %v464 = vld [vmem:[#allocation7 + $0xc] sm:$0xf]
    %v465 = vld [vmem:[#allocation7 + $0x10] sm:$0xf]
    %v466 = vld [vmem:[#allocation7 + $0x14] sm:$0xf]
    %v467 = vld [vmem:[#allocation7 + $0x18] sm:$0xf]
    %v468 = vld [vmem:[#allocation7 + $0x1c] sm:$0xf]
    %v469 = vld [vmem:[#allocation7 + $0x20] sm:$0xf]
    %v470 = vld [vmem:[#allocation7 + $0x24] sm:$0xf]
    %v471 = vld [vmem:[#allocation7 + $0x28] sm:$0xf]
    %v472 = vld [vmem:[#allocation7 + $0x2c] sm:$0xf]
    %v473 = vld [vmem:[#allocation7 + $0x30] sm:$0xf]
    %v474 = vld [vmem:[#allocation7 + $0x34] sm:$0xf]
    %v475 = vld [vmem:[#allocation7 + $0x38] sm:$0xf]
    %v476 = vld [vmem:[#allocation7 + $0x3c] sm:$0xf]
    %v477 = vld [vmem:[%s8] sm:$0x1]
    %v479 = vperm.slane %v477, 0
    %v497 = vunpack.c.l.b16 %v461
    %v498 = vunpack.c.l.b16 %v462
    %v499 = vunpack.c.l.b16 %v463
    %v500 = vunpack.c.l.b16 %v464
    %v501 = vunpack.c.l.b16 %v465
    %v502 = vunpack.c.l.b16 %v466
    %v503 = vunpack.c.l.b16 %v467
    %v504 = vunpack.c.l.b16 %v468
    %v505 = vunpack.c.l.b16 %v469
    %v506 = vunpack.c.l.b16 %v470
    %v507 = vunpack.c.l.b16 %v471
    %v508 = vunpack.c.l.b16 %v472
    %v509 = vunpack.c.l.b16 %v473
    %v510 = vunpack.c.l.b16 %v474
    %v511 = vunpack.c.l.b16 %v475
    %v512 = vunpack.c.l.b16 %v476
    %v513 = vpack.c.b16 %v498, %v497
    %v514 = vpack.c.b16 %v500, %v499
    %v515 = vpack.c.b16 %v502, %v501
    %v516 = vpack.c.b16 %v504, %v503
    %v517 = vpack.c.b16 %v506, %v505
    %v518 = vpack.c.b16 %v508, %v507
    %v519 = vpack.c.b16 %v510, %v509
    %v520 = vpack.c.b16 %v512, %v511
    %529 = vmatpush.bf16.msra.mxu0 %v520
    %530 = vmatpush.bf16.msra.mxu0 %v519
    %531 = vmatpush.bf16.msra.mxu0 %v518
    %532 = vmatpush.bf16.msra.mxu0 %v517
    %533 = vmatpush.bf16.msra.mxu0 %v516
    %534 = vmatpush.bf16.msra.mxu0 %v515
    %535 = vmatpush.bf16.msra.mxu0 %v514
    %536 = vmatpush.bf16.msra.mxu0 %v513
    %537 = vmatmul.bf16.gmra.mxu0 %v460
    %v538 = vpop.f32.mrf.mxu0
    %v539 = vadd.f32 %v479, %v538
    %v540 = vpop.f32.mrf.mxu0
    %541 = vdwg.mxu0
    %v542 = vmax.f32 %v539, 0.0
    %v543 = vpack.c.bf16 %v542, %v542
    %v544 = vld [vmem:[#allocation9] sm:$0xf]
    %v545 = vld [vmem:[#allocation9 + $0x4] sm:$0xf]
    %v546 = vld [vmem:[#allocation9 + $0x8] sm:$0xf]
    %v547 = vld [vmem:[#allocation9 + $0xc] sm:$0xf]
    %v548 = vld [vmem:[#allocation9 + $0x10] sm:$0xf]
    %v549 = vld [vmem:[#allocation9 + $0x14] sm:$0xf]
    %v550 = vld [vmem:[#allocation9 + $0x18] sm:$0xf]
    %v551 = vld [vmem:[#allocation9 + $0x1c] sm:$0xf]
    %v552 = vld [vmem:[#allocation9 + $0x20] sm:$0xf]
    %v553 = vld [vmem:[#allocation9 + $0x24] sm:$0xf]
    %v554 = vld [vmem:[#allocation9 + $0x28] sm:$0xf]
    %v555 = vld [vmem:[#allocation9 + $0x2c] sm:$0xf]
    %v556 = vld [vmem:[#allocation9 + $0x30] sm:$0xf]
    %v557 = vld [vmem:[#allocation9 + $0x34] sm:$0xf]
    %v558 = vld [vmem:[#allocation9 + $0x38] sm:$0xf]
    %v559 = vld [vmem:[#allocation9 + $0x3c] sm:$0xf]
    %v560 = vld [vmem:[%s10] sm:$0x1]
    %v562 = vperm.slane %v560, 0
    %v580 = vunpack.c.l.b16 %v544
    %v581 = vunpack.c.l.b16 %v545
    %v582 = vunpack.c.l.b16 %v546
    %v583 = vunpack.c.l.b16 %v547
    %v584 = vunpack.c.l.b16 %v548
    %v585 = vunpack.c.l.b16 %v549
    %v586 = vunpack.c.l.b16 %v550
    %v587 = vunpack.c.l.b16 %v551
    %v588 = vunpack.c.l.b16 %v552
    %v589 = vunpack.c.l.b16 %v553
    %v590 = vunpack.c.l.b16 %v554
    %v591 = vunpack.c.l.b16 %v555
    %v592 = vunpack.c.l.b16 %v556
    %v593 = vunpack.c.l.b16 %v557
    %v594 = vunpack.c.l.b16 %v558
    %v595 = vunpack.c.l.b16 %v559
    %v596 = vpack.c.b16 %v581, %v580
    %v597 = vpack.c.b16 %v583, %v582
    %v598 = vpack.c.b16 %v585, %v584
    %v599 = vpack.c.b16 %v587, %v586
    %v600 = vpack.c.b16 %v589, %v588
    %v601 = vpack.c.b16 %v591, %v590
    %v602 = vpack.c.b16 %v593, %v592
    %v603 = vpack.c.b16 %v595, %v594
    %612 = vmatpush.bf16.msra.mxu0 %v603
    %613 = vmatpush.bf16.msra.mxu0 %v602
    %614 = vmatpush.bf16.msra.mxu0 %v601
    %615 = vmatpush.bf16.msra.mxu0 %v600
    %616 = vmatpush.bf16.msra.mxu0 %v599
    %617 = vmatpush.bf16.msra.mxu0 %v598
    %618 = vmatpush.bf16.msra.mxu0 %v597
    %619 = vmatpush.bf16.msra.mxu0 %v596
    %620 = vmatmul.bf16.gmra.mxu0 %v543
    %v621 = vpop.f32.mrf.mxu0
    %v622 = vadd.f32 %v562, %v621
    %v623 = vpop.f32.mrf.mxu0
    %624 = vdwg.mxu0
    %v625 = vpack.c.bf16 %v622, %v622
    %v626 = vld [vmem:[#allocation12] sm:$0xf]
    %v627 = vld [vmem:[#allocation12 + $0x4] sm:$0xf]
    %v628 = vld [vmem:[#allocation12 + $0x8] sm:$0xf]
    %v629 = vld [vmem:[#allocation12 + $0xc] sm:$0xf]
    %v630 = vld [vmem:[#allocation12 + $0x10] sm:$0xf]
    %v631 = vld [vmem:[#allocation12 + $0x14] sm:$0xf]
    %v632 = vld [vmem:[#allocation12 + $0x18] sm:$0xf]
    %v633 = vld [vmem:[#allocation12 + $0x1c] sm:$0xf]
    %v634 = vld [vmem:[#allocation12 + $0x20] sm:$0xf]
    %v635 = vld [vmem:[#allocation12 + $0x24] sm:$0xf]
    %v636 = vld [vmem:[#allocation12 + $0x28] sm:$0xf]
    %v637 = vld [vmem:[#allocation12 + $0x2c] sm:$0xf]
    %v638 = vld [vmem:[#allocation12 + $0x30] sm:$0xf]
    %v639 = vld [vmem:[#allocation12 + $0x34] sm:$0xf]
    %v640 = vld [vmem:[#allocation12 + $0x38] sm:$0xf]
    %v641 = vld [vmem:[#allocation12 + $0x3c] sm:$0xf]
    %v642 = vperm.slane %v296, 0
    %v659 = vunpack.c.l.b16 %v626
    %v660 = vunpack.c.l.b16 %v627
    %v661 = vunpack.c.l.b16 %v628
    %v662 = vunpack.c.l.b16 %v629
    %v663 = vunpack.c.l.b16 %v630
    %v664 = vunpack.c.l.b16 %v631
    %v665 = vunpack.c.l.b16 %v632
    %v666 = vunpack.c.l.b16 %v633
    %v667 = vunpack.c.l.b16 %v634
    %v668 = vunpack.c.l.b16 %v635
    %v669 = vunpack.c.l.b16 %v636
    %v670 = vunpack.c.l.b16 %v637
    %v671 = vunpack.c.l.b16 %v638
    %v672 = vunpack.c.l.b16 %v639
    %v673 = vunpack.c.l.b16 %v640
    %v674 = vunpack.c.l.b16 %v641
    %v675 = vpack.c.b16 %v660, %v659
    %v676 = vpack.c.b16 %v662, %v661
    %v677 = vpack.c.b16 %v664, %v663
    %v678 = vpack.c.b16 %v666, %v665
    %v679 = vpack.c.b16 %v668, %v667
    %v680 = vpack.c.b16 %v670, %v669
    %v681 = vpack.c.b16 %v672, %v671
    %v682 = vpack.c.b16 %v674, %v673
    %691 = vmatpush.bf16.msra.mxu0 %v682
    %692 = vmatpush.bf16.msra.mxu0 %v681
    %693 = vmatpush.bf16.msra.mxu0 %v680
    %694 = vmatpush.bf16.msra.mxu0 %v679
    %695 = vmatpush.bf16.msra.mxu0 %v678
    %696 = vmatpush.bf16.msra.mxu0 %v677
    %697 = vmatpush.bf16.msra.mxu0 %v676
    %698 = vmatpush.bf16.msra.mxu0 %v675
    %699 = vmatmul.bf16.gmra.mxu0 %v625
    %v700 = vpop.f32.mrf.mxu0
    %v701 = vadd.f32 %v642, %v700
    %v702 = vpop.f32.mrf.mxu0
    %703 = vdwg.mxu0
    %v704 = vmax.f32 %v701, 0.0
    %v705 = vpack.c.bf16 %v704, %v704
    %v706 = vld [vmem:[#allocation13] sm:$0xf]
    %v707 = vld [vmem:[#allocation13 + $0x4] sm:$0xf]
    %v708 = vld [vmem:[#allocation13 + $0x8] sm:$0xf]
    %v709 = vld [vmem:[#allocation13 + $0xc] sm:$0xf]
    %v710 = vld [vmem:[#allocation13 + $0x10] sm:$0xf]
    %v711 = vld [vmem:[#allocation13 + $0x14] sm:$0xf]
    %v712 = vld [vmem:[#allocation13 + $0x18] sm:$0xf]
    %v713 = vld [vmem:[#allocation13 + $0x1c] sm:$0xf]
    %v714 = vld [vmem:[#allocation13 + $0x20] sm:$0xf]
    %v715 = vld [vmem:[#allocation13 + $0x24] sm:$0xf]
    %v716 = vld [vmem:[#allocation13 + $0x28] sm:$0xf]
    %v717 = vld [vmem:[#allocation13 + $0x2c] sm:$0xf]
    %v718 = vld [vmem:[#allocation13 + $0x30] sm:$0xf]
    %v719 = vld [vmem:[#allocation13 + $0x34] sm:$0xf]
    %v720 = vld [vmem:[#allocation13 + $0x38] sm:$0xf]
    %v721 = vld [vmem:[#allocation13 + $0x3c] sm:$0xf]
    %v722 = vld [vmem:[%s15] sm:$0x1]
    %v724 = vperm.slane %v722, 0
    %v742 = vunpack.c.l.b16 %v706
    %v743 = vunpack.c.l.b16 %v707
    %v744 = vunpack.c.l.b16 %v708
    %v745 = vunpack.c.l.b16 %v709
    %v746 = vunpack.c.l.b16 %v710
    %v747 = vunpack.c.l.b16 %v711
    %v748 = vunpack.c.l.b16 %v712
    %v749 = vunpack.c.l.b16 %v713
    %v750 = vunpack.c.l.b16 %v714
    %v751 = vunpack.c.l.b16 %v715
    %v752 = vunpack.c.l.b16 %v716
    %v753 = vunpack.c.l.b16 %v717
    %v754 = vunpack.c.l.b16 %v718
    %v755 = vunpack.c.l.b16 %v719
    %v756 = vunpack.c.l.b16 %v720
    %v757 = vunpack.c.l.b16 %v721
    %v758 = vpack.c.b16 %v743, %v742
    %v759 = vpack.c.b16 %v745, %v744
    %v760 = vpack.c.b16 %v747, %v746
    %v761 = vpack.c.b16 %v749, %v748
    %v762 = vpack.c.b16 %v751, %v750
    %v763 = vpack.c.b16 %v753, %v752
    %v764 = vpack.c.b16 %v755, %v754
    %v765 = vpack.c.b16 %v757, %v756
    %774 = vmatpush.bf16.msra.mxu0 %v765
    %775 = vmatpush.bf16.msra.mxu0 %v764
    %776 = vmatpush.bf16.msra.mxu0 %v763
    %777 = vmatpush.bf16.msra.mxu0 %v762
    %778 = vmatpush.bf16.msra.mxu0 %v761
    %779 = vmatpush.bf16.msra.mxu0 %v760
    %780 = vmatpush.bf16.msra.mxu0 %v759
    %781 = vmatpush.bf16.msra.mxu0 %v758
    %782 = vmatmul.bf16.gmra.mxu0 %v705
    %v783 = vpop.f32.mrf.mxu0
    %v784 = vadd.f32 %v724, %v783
    %v785 = vpop.f32.mrf.mxu0
    %786 = vdwg.mxu0
    %v787 = vadd.f32 %v784, %v622
    %v788 = vpack.c.bf16 %v787, %v787
    %v789 = vld [vmem:[#allocation15] sm:$0xf]
    %v790 = vld [vmem:[#allocation15 + $0x4] sm:$0xf]
    %v791 = vld [vmem:[#allocation15 + $0x8] sm:$0xf]
    %v792 = vld [vmem:[#allocation15 + $0xc] sm:$0xf]
    %v793 = vld [vmem:[#allocation15 + $0x10] sm:$0xf]
    %v794 = vld [vmem:[#allocation15 + $0x14] sm:$0xf]
    %v795 = vld [vmem:[#allocation15 + $0x18] sm:$0xf]
    %v796 = vld [vmem:[#allocation15 + $0x1c] sm:$0xf]
    %v797 = vld [vmem:[#allocation15 + $0x20] sm:$0xf]
    %v798 = vld [vmem:[#allocation15 + $0x24] sm:$0xf]
    %v799 = vld [vmem:[#allocation15 + $0x28] sm:$0xf]
    %v800 = vld [vmem:[#allocation15 + $0x2c] sm:$0xf]
    %v801 = vld [vmem:[#allocation15 + $0x30] sm:$0xf]
    %v802 = vld [vmem:[#allocation15 + $0x34] sm:$0xf]
    %v803 = vld [vmem:[#allocation15 + $0x38] sm:$0xf]
    %v804 = vld [vmem:[#allocation15 + $0x3c] sm:$0xf]
    %v805 = vld [vmem:[%s17] sm:$0x1]
    %v807 = vperm.slane %v805, 0
    %v825 = vunpack.c.l.b16 %v789
    %v826 = vunpack.c.l.b16 %v790
    %v827 = vunpack.c.l.b16 %v791
    %v828 = vunpack.c.l.b16 %v792
    %v829 = vunpack.c.l.b16 %v793
    %v830 = vunpack.c.l.b16 %v794
    %v831 = vunpack.c.l.b16 %v795
    %v832 = vunpack.c.l.b16 %v796
    %v833 = vunpack.c.l.b16 %v797
    %v834 = vunpack.c.l.b16 %v798
    %v835 = vunpack.c.l.b16 %v799
    %v836 = vunpack.c.l.b16 %v800
    %v837 = vunpack.c.l.b16 %v801
    %v838 = vunpack.c.l.b16 %v802
    %v839 = vunpack.c.l.b16 %v803
    %v840 = vunpack.c.l.b16 %v804
    %v841 = vpack.c.b16 %v826, %v825
    %v842 = vpack.c.b16 %v828, %v827
    %v843 = vpack.c.b16 %v830, %v829
    %v844 = vpack.c.b16 %v832, %v831
    %v845 = vpack.c.b16 %v834, %v833
    %v846 = vpack.c.b16 %v836, %v835
    %v847 = vpack.c.b16 %v838, %v837
    %v848 = vpack.c.b16 %v840, %v839
    %857 = vmatpush.bf16.msra.mxu0 %v848
    %858 = vmatpush.bf16.msra.mxu0 %v847
    %859 = vmatpush.bf16.msra.mxu0 %v846
    %860 = vmatpush.bf16.msra.mxu0 %v845
    %861 = vmatpush.bf16.msra.mxu0 %v844
    %862 = vmatpush.bf16.msra.mxu0 %v843
    %863 = vmatpush.bf16.msra.mxu0 %v842
    %864 = vmatpush.bf16.msra.mxu0 %v841
    %865 = vmatmul.bf16.gmra.mxu0 %v788
    %v866 = vpop.f32.mrf.mxu0
    %v867 = vadd.f32 %v807, %v866
    %v868 = vpop.f32.mrf.mxu0
    %869 = vdwg.mxu0
    %v870 = vmax.f32 %v867, 0.0
    %v871 = vpack.c.bf16 %v870, %v870
    %v872 = vld [vmem:[#allocation16] sm:$0xf]
    %v873 = vld [vmem:[#allocation16 + $0x4] sm:$0xf]
    %v874 = vld [vmem:[#allocation16 + $0x8] sm:$0xf]
    %v875 = vld [vmem:[#allocation16 + $0xc] sm:$0xf]
    %v876 = vld [vmem:[#allocation16 + $0x10] sm:$0xf]
    %v877 = vld [vmem:[#allocation16 + $0x14] sm:$0xf]
    %v878 = vld [vmem:[#allocation16 + $0x18] sm:$0xf]
    %v879 = vld [vmem:[#allocation16 + $0x1c] sm:$0xf]
    %v880 = vld [vmem:[#allocation16 + $0x20] sm:$0xf]
    %v881 = vld [vmem:[#allocation16 + $0x24] sm:$0xf]
    %v882 = vld [vmem:[#allocation16 + $0x28] sm:$0xf]
    %v883 = vld [vmem:[#allocation16 + $0x2c] sm:$0xf]
    %v884 = vld [vmem:[#allocation16 + $0x30] sm:$0xf]
    %v885 = vld [vmem:[#allocation16 + $0x34] sm:$0xf]
    %v886 = vld [vmem:[#allocation16 + $0x38] sm:$0xf]
    %v887 = vld [vmem:[#allocation16 + $0x3c] sm:$0xf]
    %v888 = vld [vmem:[%s19] sm:$0x1]
    %v890 = vperm.slane %v888, 0
    %v908 = vunpack.c.l.b16 %v872
    %v909 = vunpack.c.l.b16 %v873
    %v910 = vunpack.c.l.b16 %v874
    %v911 = vunpack.c.l.b16 %v875
    %v912 = vunpack.c.l.b16 %v876
    %v913 = vunpack.c.l.b16 %v877
    %v914 = vunpack.c.l.b16 %v878
    %v915 = vunpack.c.l.b16 %v879
    %v916 = vunpack.c.l.b16 %v880
    %v917 = vunpack.c.l.b16 %v881
    %v918 = vunpack.c.l.b16 %v882
    %v919 = vunpack.c.l.b16 %v883
    %v920 = vunpack.c.l.b16 %v884
    %v921 = vunpack.c.l.b16 %v885
    %v922 = vunpack.c.l.b16 %v886
    %v923 = vunpack.c.l.b16 %v887
    %v924 = vpack.c.b16 %v909, %v908
    %v925 = vpack.c.b16 %v911, %v910
    %v926 = vpack.c.b16 %v913, %v912
    %v927 = vpack.c.b16 %v915, %v914
    %v928 = vpack.c.b16 %v917, %v916
    %v929 = vpack.c.b16 %v919, %v918
    %v930 = vpack.c.b16 %v921, %v920
    %v931 = vpack.c.b16 %v923, %v922
    %940 = vmatpush.bf16.msra.mxu0 %v931
    %941 = vmatpush.bf16.msra.mxu0 %v930
    %942 = vmatpush.bf16.msra.mxu0 %v929
    %943 = vmatpush.bf16.msra.mxu0 %v928
    %944 = vmatpush.bf16.msra.mxu0 %v927
    %945 = vmatpush.bf16.msra.mxu0 %v926
    %946 = vmatpush.bf16.msra.mxu0 %v925
    %947 = vmatpush.bf16.msra.mxu0 %v924
    %948 = vmatmul.bf16.gmra.mxu0 %v871
    %v949 = vpop.f32.mrf.mxu0
    %v950 = vadd.f32 %v890, %v949
    %v951 = vpop.f32.mrf.mxu0
    %952 = vdwg.mxu0
    %v953 = vpack.c.bf16 %v950, %v950
    %954 = vst [vmem:[%s20] sm:$0x1] %v953
    // Predicated region
    $region122: #{simple_decoder_forward.1} parent=1 // pred_check
      _
    $region123: #{simple_decoder_forward.1} parent=1 // pred_check_branch
      %956 = sbr.rel (0) target = $region125
    $region124: #{simple_decoder_forward.1} parent=1 // pred_region
      _
    $region125: #{simple_decoder_forward.1} parent=1 // pred_fallthru
      _
    // Predicated region
    $region126: #{simple_decoder_forward.1} parent=1 // pred_check
      _
    $region127: #{simple_decoder_forward.1} parent=1 // pred_check_branch
      %958 = sbr.rel (0) target = $region129
    $region128: #{simple_decoder_forward.1} parent=1 // pred_region
      _
    $region129: #{simple_decoder_forward.1} parent=1 // pred_fallthru
      _
    %959 = vsyncpa [#allocation3], 1
    %960 = vsyncpa [#allocation5], 1
    %961 = vsyncpa [#allocation8], 1
    %962 = vsyncpa [#allocation11], 1
    %963 = vsyncpa [#allocation14], 1
    %964 = vsyncpa [#allocation17], 1

</llo_original>
